<compile_context>
chip_gen: v6e
topology: v6e:2x2x1
jax: 0.10.0
libtpu: 0.0.40
codegen_flags: <defaults>
</compile_context>

<pallas_src>
import jax
import jax.numpy as jnp
from jax.experimental import pallas as pl
from jax.experimental.pallas import tpu as pltpu


def _metric_calc_kernel(h_ref, w_ref, o_ref):
    # (tm, tn) * (1, tn) elementwise broadcast multiply on the VPU.
    o_ref[...] = (h_ref[...] * w_ref[...]).astype(o_ref.dtype)


def _round_up(x: int, m: int) -> int:
    return ((x + m - 1) // m) * m


def _choose_tiles(n_rows: int, nhid: int, itemsize: int):
    """Pick (tm, tn): lane-dense tn (multiple of 128 when possible), ~4 MiB row tile."""
    if nhid % 128 == 0:
        # Largest multiple of 128 that divides nhid, capped at 2048 -> no lane padding.
        tn = 128
        for cand in range(2048, 0, -128):
            if nhid % cand == 0:
                tn = cand
                break
    else:
        # Block dim equal to the full array dim is always legal (small / odd nhid).
        tn = nhid
    target_block_bytes = 4 * 1024 * 1024
    tm = max(8, (target_block_bytes // max(1, tn * itemsize)) // 8 * 8)
    tm = min(tm, _round_up(n_rows, 8))
    return tm, tn


def metric_calc_layer(h: jax.Array, weight: jax.Array) -> jax.Array:
    """Pallas equivalent of MetricCalcLayer.forward: h * weight (broadcast over rows)."""
    N, nhid = h.shape
    assert weight.shape == (1, nhid)
    weight = weight.astype(h.dtype)  # avoid implicit f32 promotion / store-dtype mismatch
    itemsize = jnp.dtype(h.dtype).itemsize

    tm, tn = _choose_tiles(N, nhid, itemsize)
    n_pad = _round_up(N, tm)
    f_pad = _round_up(nhid, tn)
    h_p = h if (n_pad == N and f_pad == nhid) else jnp.pad(
        h, ((0, n_pad - N), (0, f_pad - nhid)))
    w_p = weight if f_pad == nhid else jnp.pad(weight, ((0, 0), (0, f_pad - nhid)))

    grid = (n_pad // tm, f_pad // tn)

    # Double-buffered h + out blocks plus the tiny weight chunk, with headroom.
    vmem_est = itemsize * (4 * tm * tn + 2 * tn)
    vmem_limit = min(max(2 * vmem_est, 16 * 1024 * 1024), 48 * 1024 * 1024)

    out = pl.pallas_call(
        _metric_calc_kernel,
        out_shape=jax.ShapeDtypeStruct((n_pad, f_pad), h.dtype),
        grid_spec=pl.GridSpec(
            grid=grid,
            in_specs=[
                pl.BlockSpec((tm, tn), lambda i, j: (i, j)),  # streaming h tile
                pl.BlockSpec((1, tn), lambda i, j: (0, j)),   # weight lane chunk (reused across rows)
            ],
            out_specs=pl.BlockSpec((tm, tn), lambda i, j: (i, j)),
        ),
        compiler_params=pltpu.CompilerParams(
            dimension_semantics=("parallel", "parallel"),  # v7x: shard across both TCs
            vmem_limit_bytes=vmem_limit,
        ),
    )(h_p, w_p)

    if n_pad != N or f_pad != nhid:
        out = out[:N, :nhid]
    return out


def xavier_uniform(key, shape, dtype=jnp.float32):
    # Matches torch.nn.init.xavier_uniform_ for a 2-D tensor:
    # fan_out = shape[0], fan_in = shape[1], bound = sqrt(6 / (fan_in + fan_out))
    fan_out, fan_in = shape
    bound = (6.0 / (fan_in + fan_out)) ** 0.5
    return jax.random.uniform(key, shape, dtype=dtype, minval=-bound, maxval=bound)


if __name__ == "__main__":
    key = jax.random.PRNGKey(0)

    # Case 1: small, "nice" shape (nhid multiple of 128).
    N1, nhid1 = 16, 128
    k1h, k1w, k2h, k2w = jax.random.split(key, 4)
    h1 = jax.random.normal(k1h, (N1, nhid1), dtype=jnp.float32)
    w1 = xavier_uniform(k1w, (1, nhid1), dtype=jnp.float32)
    out1 = jax.block_until_ready(metric_calc_layer(h1, w1))
    ref1 = h1 * w1
    assert out1.shape == (N1, nhid1) and out1.dtype == h1.dtype
    assert jnp.allclose(out1, ref1, atol=1e-6, rtol=1e-6)

    # Case 2: ragged shape (exercises padding / full-dim lane block).
    N2, nhid2 = 13, 96
    h2 = jax.random.normal(k2h, (N2, nhid2), dtype=jnp.float32)
    w2 = xavier_uniform(k2w, (1, nhid2), dtype=jnp.float32)
    out2 = jax.block_until_ready(metric_calc_layer(h2, w2))
    ref2 = h2 * w2
    assert out2.shape == (N2, nhid2) and out2.dtype == h2.dtype
    assert jnp.allclose(out2, ref2, atol=1e-6, rtol=1e-6)

    print("KERNEL_OK")
</pallas_src>

<mosaic_0001>
module attributes {stable_mosaic.version = 11 : i64} {
  func.func @_metric_calc_kernel(%arg0: i32, %arg1: i32, %arg2: memref<16x128xf32, #tpu.memory_space<vmem>>, %arg3: memref<1x128xf32, #tpu.memory_space<vmem>>, %arg4: memref<16x128xf32, #tpu.memory_space<vmem>>) attributes {dimension_semantics = [#tpu.dimension_semantics<parallel>, #tpu.dimension_semantics<parallel>], iteration_bounds = array<i64: 1, 1>, scalar_prefetch = 0 : i64, scratch_operands = 0 : i64, tpu.core_type = #tpu.core_type<tc>, window_params = [{transform_indices = @transform_0, window_bounds = array<i64: 16, 128>}, {transform_indices = @transform_1, window_bounds = array<i64: 1, 128>}, {transform_indices = @transform_2, window_bounds = array<i64: 16, 128>}]} {
    %c0 = arith.constant 0 : index
    %c0_0 = arith.constant 0 : index
    %0 = vector.load %arg2[%c0, %c0_0] : memref<16x128xf32, #tpu.memory_space<vmem>>, vector<16x128xf32>
    %c0_1 = arith.constant 0 : index
    %c0_2 = arith.constant 0 : index
    %1 = vector.load %arg3[%c0_1, %c0_2] : memref<1x128xf32, #tpu.memory_space<vmem>>, vector<1x128xf32>
    %2 = vector.broadcast %1 : vector<1x128xf32> to vector<16x128xf32>
    %3 = arith.mulf %0, %2 : vector<16x128xf32>
    %c0_3 = arith.constant 0 : index
    %c0_4 = arith.constant 0 : index
    %4 = vector.load %arg4[%c0_3, %c0_4] : memref<16x128xf32, #tpu.memory_space<vmem>>, vector<16x128xf32>
    tpu.vector_store %arg4[%c0_3, %c0_4], %3 {strides = array<i32>} : memref<16x128xf32, #tpu.memory_space<vmem>>, vector<16x128xf32>,
    return
  }
  func.func @transform_0(%arg0: i32, %arg1: i32) -> (i32, i32) {
    %c0_i32 = arith.constant 0 : i32
    return %arg0, %arg1 : i32, i32
  }
  func.func @transform_1(%arg0: i32, %arg1: i32) -> (i32, i32) {
    %c0_i32 = arith.constant 0 : i32
    %c0_i32_0 = arith.constant 0 : i32
    return %c0_i32, %arg1 : i32, i32
  }
  func.func @transform_2(%arg0: i32, %arg1: i32) -> (i32, i32) {
    %c0_i32 = arith.constant 0 : i32
    return %arg0, %arg1 : i32, i32
  }
}

</mosaic_0001>

<llo_original>
// kernel: tpu_custom_call.1
$region0: #{tpu_custom_call.1}
  #allocation0 [shape = 'u32[]', space=smem, size = 0x4, offset = 0x4, fixed_abs, tag = 'smem constant byte address 0x4 - core index']
  #allocation1 [shape = 'u32[144,128]{1,0:T(1,128)}', space=vmem, size = 0x12000, scoped, tag = 'internal scratch']
  %s0 = inlined_call_operand.hbm [shape: f32[16,128], index: 0, kind: input, shape index: {}]
  %s1 = inlined_call_operand.vmem [shape: f32[1,128], index: 1, kind: input, shape index: {}]
  %s2 = inlined_call_operand.hbm [shape: f32[16,128], index: 2, kind: output, shape index: {}]
  %s3 = sld [smem:[#allocation0]]
  $region22: #{tpu_custom_call.1} parent=0
    _
  %s5 = ssub.s32 1, %s3
  %s6 = scalar_select 0, %s5, %s3
  $region1: #{tpu_custom_call.1} parent=0
    #allocation2 [shape = 'u8[8192]{0}', space=vmem, size = 0x2000, scoped, tag = 'input window, operand 0, single buffered']
    #allocation3 [shape = 's32[1]{0}', space=sflag, size = 0x4, scoped, tag = 'scoped memory for tpu_custom_call.1']
    #allocation4 [shape = 's32[1]{0}', space=sflag, size = 0x4, scoped, tag = 'scoped memory for tpu_custom_call.1']
    #allocation5 [shape = 'u8[8192]{0}', space=vmem, size = 0x2000, scoped, tag = 'output window, operand 0, single buffered']
    %7 = vsyncpa [#allocation3], 0
    %8 = vsyncpa [#allocation4], 0
    // Predicated region
    $region2: #{tpu_custom_call.1} parent=1 // pred_check
      _
    $region3: #{tpu_custom_call.1} parent=1 // pred_check_branch
      %10 = sbr.rel (0) target = $region5
    $region4: #{tpu_custom_call.1} parent=1 // pred_region
      %s12 = ssub.s32 256, 256
      %13 = vsyncadd [#allocation3], %s12
      %s14 = sshll.u32 [#allocation2], 4
      %s15 = int_to_ptr.vmem [resolvable:$true] %s14
      %20 = dma.hbm_to_vmem [thread:$0]  %s0, 256, %s15, [#allocation3], 128, 128, 8
    $region5: #{tpu_custom_call.1} parent=1 // pred_fallthru
      _
    // Predicated region
    $region6: #{tpu_custom_call.1} parent=1 // pred_check
      _
    $region7: #{tpu_custom_call.1} parent=1 // pred_check_branch
      %22 = sbr.rel (0) target = $region9
    $region8: #{tpu_custom_call.1} parent=1 // pred_region
      _
    $region9: #{tpu_custom_call.1} parent=1 // pred_fallthru
      _
    // Predicated region
    $region10: #{tpu_custom_call.1} parent=1 // pred_check
      _
    $region11: #{tpu_custom_call.1} parent=1 // pred_check_branch
      %24 = sbr.rel (0) target = $region13
    $region12: #{tpu_custom_call.1} parent=1 // pred_region
      %25 = dma.done [#allocation3], 256
    $region13: #{tpu_custom_call.1} parent=1 // pred_fallthru
      _
    %v26 = vld [vmem:[#allocation2] sm:$0xff]
    %v27 = vld [vmem:[#allocation2 + $0x8] sm:$0xff]
    %v28 = vld [vmem:[%s1] sm:$0x1]
    %v30 = vlaneseq
    %v31 = vshrl.u32 %v30, 7
    %v32 = vsub.s32 0, %v31
    %v33 = vrot.slane %v28, %v32
    %v35 = vmul.f32 %v26, %v33
    %v36 = vmul.f32 %v27, %v33
    %37 = vst [vmem:[#allocation5] sm:$0xff] %v35
    %38 = vst [vmem:[#allocation5 + $0x8] sm:$0xff] %v36
    // Predicated region
    $region14: #{tpu_custom_call.1} parent=1 // pred_check
      _
    $region15: #{tpu_custom_call.1} parent=1 // pred_check_branch
      %40 = sbr.rel (0) target = $region17
    $region16: #{tpu_custom_call.1} parent=1 // pred_region
      %s42 = ssub.s32 256, 256
      %43 = vsyncadd [#allocation4], %s42
      %s44 = sshll.u32 [#allocation5], 4
      %s45 = int_to_ptr.vmem [resolvable:$true] %s44
      %50 = dma.vmem_to_hbm [thread:$0]  %s45, 256, %s2, [#allocation4], 128, 128, 8
    $region17: #{tpu_custom_call.1} parent=1 // pred_fallthru
      _
    // Predicated region
    $region18: #{tpu_custom_call.1} parent=1 // pred_check
      _
    $region19: #{tpu_custom_call.1} parent=1 // pred_check_branch
      %52 = sbr.rel (0) target = $region21
    $region20: #{tpu_custom_call.1} parent=1 // pred_region
      %53 = dma.done [#allocation4], 256
    $region21: #{tpu_custom_call.1} parent=1 // pred_fallthru
      _
    %54 = vsyncpa [#allocation3], 1
    %55 = vsyncpa [#allocation4], 1

</llo_original>
